<compile_context>
chip_gen: v6e
topology: v6e:2x2x1
jax: 0.10.0
libtpu: 0.0.40
codegen_flags: <defaults>
</compile_context>

<pallas_src>
import functools

import jax
import jax.numpy as jnp
from jax.experimental import pallas as pl
from jax.experimental.pallas import tpu as pltpu


_LANE = 128          # output (lane) padding -> lane-dense stores / MXU N dim
_SUBLANE = 16        # bf16 sublane packing granularity for contraction dims


def _round_up(x, m):
    return ((x + m - 1) // m) * m


# ---------------------------------------------------------------------------
# Fused multi-layer ChebConv(k=2) kernel (whole graph resident in VMEM).
# ---------------------------------------------------------------------------
def _chebnet_fused_kernel(*refs, nlayers):
    """refs = (ahat_hbm, x, w0_0, w1_0, b_0, ..., w0_{L-1}, w1_{L-1}, b_{L-1},
               out, ahat_vmem)

    ahat_hbm : ANY/HBM (Np, Np) bf16   normalized adjacency D^-1/2 A^T D^-1/2
    x        : VMEM (Np, K0)    bf16   node features, K0 = round_up(Fin0, 16)
    w0_l     : VMEM (Kl, Fl)    bf16   W0 + (re-1)*W1  (folded in f32 at prepare)
    w1_l     : VMEM (Kl, Fl)    bf16   -re * W1
    b_l      : VMEM (1,  Fl)    f32
    out      : VMEM (Np, F_last) f32
    ahat_vmem: VMEM scratch (Np, Np) bf16  (single-buffered copy of Ahat)
    """
    ahat_hbm = refs[0]
    x_ref = refs[1]
    out_ref = refs[2 + 3 * nlayers]
    ahat_vmem = refs[3 + 3 * nlayers]

    # Single-buffered manual copy of the O(N^2) operand: at grid=(1,) the
    # auto-pipeline would still allocate two buffers for it even though there is
    # nothing to pipeline; this halves the dominant VMEM term.
    pltpu.sync_copy(ahat_hbm, ahat_vmem)
    ahat = ahat_vmem[...]

    h = x_ref[...]            # bf16 activations feeding the MXU
    h_f32 = None
    for l in range(nlayers):
        w0 = refs[2 + 3 * l][...]
        w1 = refs[3 + 3 * l][...]
        b = refs[4 + 3 * l][...]
        k = w0.shape[0]
        # Lanes of h beyond this layer's true Fin are exactly zero (zero-padded
        # weight columns / bias), so a static lane-slice down to the 16-aligned
        # contraction width is lossless and only trims W DMA / VMEM bytes.
        hk = h if h.shape[1] == k else h[:, :k]

        # message-passing term Ahat @ h  (bf16 MXU operands, f32 accumulation)
        ax = jnp.dot(ahat, hk, preferred_element_type=jnp.float32)

        # out_l = h @ (W0 + (re-1) W1) + (Ahat h) @ (-re W1) + b
        h_f32 = (jnp.dot(hk, w0, preferred_element_type=jnp.float32)
                 + jnp.dot(ax.astype(w1.dtype), w1,
                           preferred_element_type=jnp.float32)
                 + b)
        h = h_f32.astype(h.dtype)
        # dropout between layers: inference-mode identity.

    out_ref[...] = h_f32


# ---------------------------------------------------------------------------
# One-time per-graph / per-weights preprocessing (cache the result).
# ---------------------------------------------------------------------------
def prepare_chebnet(adj, params, compute_dtype=jnp.bfloat16):
    """Returns (ahat_p, layer_params) ready for `chebnet_apply`.

    Does graph normalization, lambda_max (dense eigvalsh, O(N^3)), folds the
    T1 recurrence + re into the weights in f32, pads to TPU-friendly shapes and
    casts the MXU operands to bf16.  Run once per (graph, weights) and reuse.
    """
    adj = jnp.asarray(adj, jnp.float32)
    n = adj.shape[0]

    in_deg = jnp.clip(adj.sum(axis=0), 1.0, None)        # in_degree[i] = sum_j A[j, i]
    norm = 1.0 / jnp.sqrt(in_deg)
    ahat = norm[:, None] * adj.T * norm[None, :]          # D^-1/2 A^T D^-1/2

    lap = jnp.eye(n, dtype=jnp.float32) - norm[:, None] * adj * norm[None, :]
    lambda_max = jnp.max(jnp.linalg.eigvalsh(lap))
    re_norm = 2.0 / lambda_max

    n_pad = _round_up(n, _SUBLANE)
    ahat_p = jnp.pad(ahat, ((0, n_pad - n), (0, n_pad - n))).astype(compute_dtype)

    layer_params = []
    for (w0, w1, b) in params:
        w0 = jnp.asarray(w0, jnp.float32)
        w1 = jnp.asarray(w1, jnp.float32)
        b = jnp.reshape(jnp.asarray(b, jnp.float32), (1, -1))
        fin, fout = w0.shape
        kpad = _round_up(fin, _SUBLANE)     # contraction axis: sublane granularity only
        fpad = _round_up(fout, _LANE)       # output axis: 128 lanes (lane-dense)

        # fold T1 recurrence + re into the weights, in f32, cast once afterwards
        w0_eff = w0 + (re_norm - 1.0) * w1
        w1_eff = -re_norm * w1

        w0_p = jnp.pad(w0_eff, ((0, kpad - fin), (0, fpad - fout))).astype(compute_dtype)
        w1_p = jnp.pad(w1_eff, ((0, kpad - fin), (0, fpad - fout))).astype(compute_dtype)
        b_p = jnp.pad(b, ((0, 0), (0, fpad - fout)))       # stays f32
        layer_params.append((w0_p, w1_p, b_p))

    return ahat_p, tuple(layer_params)


# ---------------------------------------------------------------------------
# Per-call forward: pad features + one fused pallas_call.
# ---------------------------------------------------------------------------
@functools.partial(jax.jit, static_argnames=("out_size",))
def chebnet_apply(ahat_p, layer_params, feats, *, out_size):
    nlayers = len(layer_params)
    assert nlayers >= 1
    n, fin = feats.shape
    n_pad = ahat_p.shape[0]
    compute_dtype = ahat_p.dtype

    kpad0 = layer_params[0][0].shape[0]
    fpad_last = layer_params[-1][0].shape[1]

    x_p = jnp.pad(feats.astype(compute_dtype), ((0, n_pad - n), (0, kpad0 - fin)))

    flat_params = []
    in_specs = [
        pl.BlockSpec(memory_space=pl.ANY),                  # Ahat: stays in HBM,
        pl.BlockSpec((n_pad, kpad0), lambda i: (0, 0)),     #   single VMEM copy in-kernel
    ]
    for (w0_p, w1_p, b_p) in layer_params:
        for arr in (w0_p, w1_p, b_p):
            flat_params.append(arr)
            in_specs.append(pl.BlockSpec(arr.shape, lambda i: (0, 0)))

    # Explicit VMEM budget: single-buffered Ahat + double-buffered small operands.
    ahat_bytes = ahat_p.size * ahat_p.dtype.itemsize
    small_bytes = (x_p.size * x_p.dtype.itemsize
                   + sum(a.size * a.dtype.itemsize for a in flat_params))
    out_bytes = n_pad * fpad_last * 4
    vmem_limit = min(ahat_bytes + 2 * (small_bytes + out_bytes) + (4 << 20),
                     64 << 20)   # never ask for more than v7x physical VMEM

    kernel = functools.partial(_chebnet_fused_kernel, nlayers=nlayers)

    out_p = pl.pallas_call(
        kernel,
        out_shape=jax.ShapeDtypeStruct((n_pad, fpad_last), jnp.float32),
        grid_spec=pltpu.PrefetchScalarGridSpec(
            num_scalar_prefetch=0,
            grid=(1,),   # whole (padded) graph fused in one grid step
            in_specs=in_specs,
            out_specs=pl.BlockSpec((n_pad, fpad_last), lambda i: (0, 0)),
            scratch_shapes=[pltpu.VMEM((n_pad, n_pad), compute_dtype)],
        ),
        compiler_params=pltpu.CompilerParams(
            dimension_semantics=("arbitrary",),
            vmem_limit_bytes=int(vmem_limit)),
    )(ahat_p, x_p, *flat_params)

    # slice off node padding and output-lane padding
    return out_p[:n, :out_size]


# ---------------------------------------------------------------------------
# References.
# ---------------------------------------------------------------------------
def _reference_forward_f32(adj, feats, params):
    """Pure-JAX f32 reference mirroring dgl.nn.ChebConv (k=2) semantics."""
    adj = adj.astype(jnp.float32)
    n = adj.shape[0]
    in_deg = jnp.clip(adj.sum(axis=0), 1.0, None)
    norm = 1.0 / jnp.sqrt(in_deg)
    lap = jnp.eye(n, dtype=jnp.float32) - norm[:, None] * adj * norm[None, :]
    lambda_max = jnp.max(jnp.linalg.eigvalsh(lap))
    re = 2.0 / lambda_max
    h = feats.astype(jnp.float32)
    for (w0, w1, b) in params:
        msg = norm[:, None] * (adj.T @ (h * norm[:, None]))
        x1 = -re * msg + (re - 1.0) * h
        h = h @ w0 + x1 @ w1 + jnp.reshape(b, (1, -1))
    return h


def _reference_forward_bf16(adj, feats, params):
    """Reference applying the same bf16 operand quantization / f32 accumulation
    pattern as the kernel (weight folding in f32, bf16 matmul inputs)."""
    q = lambda a: jnp.asarray(a, jnp.float32).astype(jnp.bfloat16).astype(jnp.float32)
    adj = adj.astype(jnp.float32)
    n = adj.shape[0]
    in_deg = jnp.clip(adj.sum(axis=0), 1.0, None)
    norm = 1.0 / jnp.sqrt(in_deg)
    ahat = q(norm[:, None] * adj.T * norm[None, :])
    lap = jnp.eye(n, dtype=jnp.float32) - norm[:, None] * adj * norm[None, :]
    lambda_max = jnp.max(jnp.linalg.eigvalsh(lap))
    re = 2.0 / lambda_max
    h = q(feats)
    h_f32 = None
    for (w0, w1, b) in params:
        w0_eff = q(w0.astype(jnp.float32) + (re - 1.0) * w1)
        w1_eff = q(-re * w1.astype(jnp.float32))
        ax = q(ahat @ h)
        h_f32 = h @ w0_eff + ax @ w1_eff + jnp.reshape(b, (1, -1)).astype(jnp.float32)
        h = q(h_f32)
    return h_f32


if __name__ == "__main__":
    key = jax.random.PRNGKey(0)
    N, IN_SIZE, HID_SIZE, OUT_SIZE = 64, 16, 32, 8   # nlayers = 2, k = 2

    k_adj, k_feat, k_l1, k_l2 = jax.random.split(key, 4)

    # small undirected random graph, no self loops
    a = (jax.random.uniform(k_adj, (N, N)) < 0.10).astype(jnp.float32)
    a = jnp.maximum(a, a.T) * (1.0 - jnp.eye(N, dtype=jnp.float32))

    x = jax.random.normal(k_feat, (N, IN_SIZE), dtype=jnp.float32)

    def init_chebconv(k, fin, fout):
        # dgl ChebConv(k=2) == nn.Linear(2*fin, fout); split weight into W0 / W1,
        # stored pre-transposed as (fin, fout).
        kw, kb = jax.random.split(k)
        lim = 1.0 / jnp.sqrt(2.0 * fin)
        w = jax.random.uniform(kw, (2 * fin, fout), minval=-lim, maxval=lim,
                               dtype=jnp.float32)
        b = jax.random.uniform(kb, (fout,), minval=-lim, maxval=lim,
                               dtype=jnp.float32)
        return w[:fin], w[fin:], b

    params = [init_chebconv(k_l1, IN_SIZE, HID_SIZE),
              init_chebconv(k_l2, HID_SIZE, OUT_SIZE)]

    # one-time, per-graph: eigvalsh + normalization + padding + weight folding + bf16
    ahat_p, layer_params = prepare_chebnet(a, params)
    ahat_p, layer_params = jax.block_until_ready((ahat_p, layer_params))

    # per-call forward: one fused pallas_call
    out = chebnet_apply(ahat_p, layer_params, x, out_size=OUT_SIZE)
    out = jax.block_until_ready(out)
    assert out.shape == (N, OUT_SIZE), out.shape

    # tight check against a reference with the same bf16 quantization points
    ref_q = _reference_forward_bf16(a, x, params)
    err_q = float(jnp.max(jnp.abs(out - ref_q)))
    assert jnp.allclose(out, ref_q, atol=5e-3, rtol=5e-3), err_q

    # loose semantic check against the pure f32 reference (bf16 operands cost
    # ~3 significant digits, so tolerance is relaxed accordingly)
    ref = _reference_forward_f32(a, x, params)
    err = float(jnp.max(jnp.abs(out - ref)))
    assert jnp.allclose(out, ref, atol=8e-2, rtol=8e-2), err

    print("KERNEL_OK")
</pallas_src>

<mosaic_0001>
module attributes {stable_mosaic.version = 11 : i64} {
  func.func @_chebnet_fused_kernel(%arg0: i32, %arg1: memref<64x64xbf16, #tpu.memory_space<any>>, %arg2: memref<64x16xbf16, #tpu.memory_space<vmem>>, %arg3: memref<16x128xbf16, #tpu.memory_space<vmem>>, %arg4: memref<16x128xbf16, #tpu.memory_space<vmem>>, %arg5: memref<1x128xf32, #tpu.memory_space<vmem>>, %arg6: memref<32x128xbf16, #tpu.memory_space<vmem>>, %arg7: memref<32x128xbf16, #tpu.memory_space<vmem>>, %arg8: memref<1x128xf32, #tpu.memory_space<vmem>>, %arg9: memref<64x128xf32, #tpu.memory_space<vmem>>, %arg10: memref<64x64xbf16, #tpu.memory_space<vmem>>) attributes {dimension_semantics = [#tpu.dimension_semantics<arbitrary>], iteration_bounds = array<i64: 1>, scalar_prefetch = 0 : i64, scratch_operands = 1 : i64, tpu.core_type = #tpu.core_type<tc>, window_params = [{}, {pipeline_mode = #tpu.pipeline_mode<synchronous>, transform_indices = @transform_1, window_bounds = array<i64: 64, 16>}, {pipeline_mode = #tpu.pipeline_mode<synchronous>, transform_indices = @transform_2, window_bounds = array<i64: 16, 128>}, {pipeline_mode = #tpu.pipeline_mode<synchronous>, transform_indices = @transform_3, window_bounds = array<i64: 16, 128>}, {pipeline_mode = #tpu.pipeline_mode<synchronous>, transform_indices = @transform_4, window_bounds = array<i64: 1, 128>}, {pipeline_mode = #tpu.pipeline_mode<synchronous>, transform_indices = @transform_5, window_bounds = array<i64: 32, 128>}, {pipeline_mode = #tpu.pipeline_mode<synchronous>, transform_indices = @transform_6, window_bounds = array<i64: 32, 128>}, {pipeline_mode = #tpu.pipeline_mode<synchronous>, transform_indices = @transform_7, window_bounds = array<i64: 1, 128>}, {pipeline_mode = #tpu.pipeline_mode<synchronous>, transform_indices = @transform_8, window_bounds = array<i64: 64, 128>}]} {
    "tpu.region"() ({
      %25 = tpu.sem_alloc : memref<!tpu.dma_semaphore, #tpu.memory_space<semaphore_mem>>
      tpu.enqueue_dma source(%arg1 : memref<64x64xbf16, #tpu.memory_space<any>>) target(%arg10 : memref<64x64xbf16, #tpu.memory_space<vmem>>) target_semaphore(%25 : memref<!tpu.dma_semaphore, #tpu.memory_space<semaphore_mem>>)
      tpu.wait_dma2 semaphore(%25 : memref<!tpu.dma_semaphore, #tpu.memory_space<semaphore_mem>>) src(%arg1 : memref<64x64xbf16, #tpu.memory_space<any>>) dst(%arg10 : memref<64x64xbf16, #tpu.memory_space<vmem>>)
      tpu.yield
    }) : () -> ()
    %c0 = arith.constant 0 : index
    %c0_0 = arith.constant 0 : index
    %0 = vector.load %arg10[%c0, %c0_0] : memref<64x64xbf16, #tpu.memory_space<vmem>>, vector<64x64xbf16>
    %c0_1 = arith.constant 0 : index
    %c0_2 = arith.constant 0 : index
    %1 = vector.load %arg2[%c0_1, %c0_2] : memref<64x16xbf16, #tpu.memory_space<vmem>>, vector<64x16xbf16>
    %c0_3 = arith.constant 0 : index
    %c0_4 = arith.constant 0 : index
    %2 = vector.load %arg3[%c0_3, %c0_4] : memref<16x128xbf16, #tpu.memory_space<vmem>>, vector<16x128xbf16>
    %c0_5 = arith.constant 0 : index
    %c0_6 = arith.constant 0 : index
    %3 = vector.load %arg4[%c0_5, %c0_6] : memref<16x128xbf16, #tpu.memory_space<vmem>>, vector<16x128xbf16>
    %c0_7 = arith.constant 0 : index
    %c0_8 = arith.constant 0 : index
    %4 = vector.load %arg5[%c0_7, %c0_8] : memref<1x128xf32, #tpu.memory_space<vmem>>, vector<1x128xf32>
    %cst = arith.constant dense<0.000000e+00> : vector<64x16xf32>
    %5 = tpu.matmul %0, %1, %cst {dimension_numbers = #tpu.dot_dimension_numbers<[1], [0], [0], [1], [0, 0, 1, 1], [], []>} : vector<64x64xbf16>, vector<64x16xbf16>, vector<64x16xf32> -> vector<64x16xf32>
    %cst_9 = arith.constant dense<0.000000e+00> : vector<64x128xf32>
    %6 = tpu.matmul %1, %2, %cst_9 {dimension_numbers = #tpu.dot_dimension_numbers<[1], [0], [0], [1], [0, 0, 1, 1], [], []>} : vector<64x16xbf16>, vector<16x128xbf16>, vector<64x128xf32> -> vector<64x128xf32>
    %7 = arith.truncf %5 : vector<64x16xf32> to vector<64x16xbf16>
    %cst_10 = arith.constant dense<0.000000e+00> : vector<64x128xf32>
    %8 = tpu.matmul %7, %3, %cst_10 {dimension_numbers = #tpu.dot_dimension_numbers<[1], [0], [0], [1], [0, 0, 1, 1], [], []>} : vector<64x16xbf16>, vector<16x128xbf16>, vector<64x128xf32> -> vector<64x128xf32>
    %9 = arith.addf %6, %8 : vector<64x128xf32>
    %10 = vector.broadcast %4 : vector<1x128xf32> to vector<64x128xf32>
    %11 = arith.addf %9, %10 : vector<64x128xf32>
    %12 = arith.truncf %11 : vector<64x128xf32> to vector<64x128xbf16>
    %c0_11 = arith.constant 0 : index
    %c0_12 = arith.constant 0 : index
    %13 = vector.load %arg6[%c0_11, %c0_12] : memref<32x128xbf16, #tpu.memory_space<vmem>>, vector<32x128xbf16>
    %c0_13 = arith.constant 0 : index
    %c0_14 = arith.constant 0 : index
    %14 = vector.load %arg7[%c0_13, %c0_14] : memref<32x128xbf16, #tpu.memory_space<vmem>>, vector<32x128xbf16>
    %c0_15 = arith.constant 0 : index
    %c0_16 = arith.constant 0 : index
    %15 = vector.load %arg8[%c0_15, %c0_16] : memref<1x128xf32, #tpu.memory_space<vmem>>, vector<1x128xf32>
    %16 = vector.extract_strided_slice %12 {offsets = [0, 0], sizes = [64, 32], strides = [1, 1]} : vector<64x128xbf16> to vector<64x32xbf16>
    %cst_17 = arith.constant dense<0.000000e+00> : vector<64x32xf32>
    %17 = tpu.matmul %0, %16, %cst_17 {dimension_numbers = #tpu.dot_dimension_numbers<[1], [0], [0], [1], [0, 0, 1, 1], [], []>} : vector<64x64xbf16>, vector<64x32xbf16>, vector<64x32xf32> -> vector<64x32xf32>
    %cst_18 = arith.constant dense<0.000000e+00> : vector<64x128xf32>
    %18 = tpu.matmul %16, %13, %cst_18 {dimension_numbers = #tpu.dot_dimension_numbers<[1], [0], [0], [1], [0, 0, 1, 1], [], []>} : vector<64x32xbf16>, vector<32x128xbf16>, vector<64x128xf32> -> vector<64x128xf32>
    %19 = arith.truncf %17 : vector<64x32xf32> to vector<64x32xbf16>
    %cst_19 = arith.constant dense<0.000000e+00> : vector<64x128xf32>
    %20 = tpu.matmul %19, %14, %cst_19 {dimension_numbers = #tpu.dot_dimension_numbers<[1], [0], [0], [1], [0, 0, 1, 1], [], []>} : vector<64x32xbf16>, vector<32x128xbf16>, vector<64x128xf32> -> vector<64x128xf32>
    %21 = arith.addf %18, %20 : vector<64x128xf32>
    %22 = vector.broadcast %15 : vector<1x128xf32> to vector<64x128xf32>
    %23 = arith.addf %21, %22 : vector<64x128xf32>
    %c0_20 = arith.constant 0 : index
    %c0_21 = arith.constant 0 : index
    %24 = vector.load %arg9[%c0_20, %c0_21] : memref<64x128xf32, #tpu.memory_space<vmem>>, vector<64x128xf32>
    tpu.vector_store %arg9[%c0_20, %c0_21], %23 {strides = array<i32>} : memref<64x128xf32, #tpu.memory_space<vmem>>, vector<64x128xf32>,
    return
  }
  func.func @transform_1(%arg0: i32) -> (i32, i32) {
    %c0_i32 = arith.constant 0 : i32
    %c0_i32_0 = arith.constant 0 : i32
    %c0_i32_1 = arith.constant 0 : i32
    return %c0_i32, %c0_i32_0 : i32, i32
  }
  func.func @transform_2(%arg0: i32) -> (i32, i32) {
    %c0_i32 = arith.constant 0 : i32
    %c0_i32_0 = arith.constant 0 : i32
    %c0_i32_1 = arith.constant 0 : i32
    return %c0_i32, %c0_i32_0 : i32, i32
  }
  func.func @transform_3(%arg0: i32) -> (i32, i32) {
    %c0_i32 = arith.constant 0 : i32
    %c0_i32_0 = arith.constant 0 : i32
    %c0_i32_1 = arith.constant 0 : i32
    return %c0_i32, %c0_i32_0 : i32, i32
  }
  func.func @transform_4(%arg0: i32) -> (i32, i32) {
    %c0_i32 = arith.constant 0 : i32
    %c0_i32_0 = arith.constant 0 : i32
    %c0_i32_1 = arith.constant 0 : i32
    return %c0_i32, %c0_i32_0 : i32, i32
  }
  func.func @transform_5(%arg0: i32) -> (i32, i32) {
    %c0_i32 = arith.constant 0 : i32
    %c0_i32_0 = arith.constant 0 : i32
    %c0_i32_1 = arith.constant 0 : i32
    return %c0_i32, %c0_i32_0 : i32, i32
  }
  func.func @transform_6(%arg0: i32) -> (i32, i32) {
    %c0_i32 = arith.constant 0 : i32
    %c0_i32_0 = arith.constant 0 : i32
    %c0_i32_1 = arith.constant 0 : i32
    return %c0_i32, %c0_i32_0 : i32, i32
  }
  func.func @transform_7(%arg0: i32) -> (i32, i32) {
    %c0_i32 = arith.constant 0 : i32
    %c0_i32_0 = arith.constant 0 : i32
    %c0_i32_1 = arith.constant 0 : i32
    return %c0_i32, %c0_i32_0 : i32, i32
  }
  func.func @transform_8(%arg0: i32) -> (i32, i32) {
    %c0_i32 = arith.constant 0 : i32
    %c0_i32_0 = arith.constant 0 : i32
    %c0_i32_1 = arith.constant 0 : i32
    return %c0_i32, %c0_i32_0 : i32, i32
  }
}

</mosaic_0001>

<llo_original>
// kernel: chebnet_apply.1
$region0: #{chebnet_apply.1}
  #allocation0 [shape = 'u32[]', space=smem, size = 0x4, offset = 0x4, fixed_abs, tag = 'smem constant byte address 0x4 - core index']
  #allocation1 [shape = 'u32[144,128]{1,0:T(1,128)}', space=vmem, size = 0x12000, scoped, tag = 'internal scratch']
  #allocation2 [shape = 'bf16[64,64]{1,0:T(8,128)(2,1)}', space=vmem, size = 0x4000, scoped, tag = 'scratch operand']
  #allocation8 [shape = 's32[]', space=sflag, size = 0x4, offset = 0, fixed_abs, tag = 'sflag constant byte address 0x0 - dummy sync flag']
  %s0 = inlined_call_operand.vmem [shape: bf16[64,64], index: 0, kind: input, shape index: {}]
  %s1 = inlined_call_operand.vmem [shape: bf16[64,16], index: 1, kind: input, shape index: {}]
  %s2 = inlined_call_operand.hbm [shape: bf16[16,128], index: 2, kind: input, shape index: {}]
  %s3 = inlined_call_operand.hbm [shape: bf16[16,128], index: 3, kind: input, shape index: {}]
  %s4 = inlined_call_operand.vmem [shape: f32[1,128], index: 4, kind: input, shape index: {}]
  %s5 = inlined_call_operand.vmem [shape: bf16[32,128], index: 5, kind: input, shape index: {}]
  %s6 = inlined_call_operand.vmem [shape: bf16[32,128], index: 6, kind: input, shape index: {}]
  %s7 = inlined_call_operand.vmem [shape: f32[1,128], index: 7, kind: input, shape index: {}]
  %s8 = inlined_call_operand.vmem [shape: f32[64,128], index: 8, kind: output, shape index: {}]
  %s9 = sld [smem:[#allocation0]]
  $region81: #{chebnet_apply.1} parent=0
    _
  %s11 = ssub.s32 1, %s9
  %s12 = scalar_select 0, %s11, %s9
  $region1: #{chebnet_apply.1} parent=0
    #allocation3 [shape = 'u8[4096]{0}', space=vmem, size = 0x1000, scoped, tag = 'input window, operand 2, single buffered']
    #allocation4 [shape = 's32[1]{0}', space=sflag, size = 0x4, scoped, tag = 'scoped memory for chebnet_apply.1']
    #allocation5 [shape = 'u8[4096]{0}', space=vmem, size = 0x1000, scoped, tag = 'input window, operand 3, single buffered']
    #allocation6 [shape = 's32[1]{0}', space=sflag, size = 0x4, scoped, tag = 'scoped memory for chebnet_apply.1']
    %13 = vsyncpa [#allocation4], 0
    %14 = vsyncpa [#allocation6], 0
    // Predicated region
    $region2: #{chebnet_apply.1} parent=1 // pred_check
      _
    $region3: #{chebnet_apply.1} parent=1 // pred_check_branch
      %16 = sbr.rel (0) target = $region5
    $region4: #{chebnet_apply.1} parent=1 // pred_region
      _
    $region5: #{chebnet_apply.1} parent=1 // pred_fallthru
      _
    // Predicated region
    $region6: #{chebnet_apply.1} parent=1 // pred_check
      _
    $region7: #{chebnet_apply.1} parent=1 // pred_check_branch
      %18 = sbr.rel (0) target = $region9
    $region8: #{chebnet_apply.1} parent=1 // pred_region
      %s20 = ssub.s32 128, 128
      %21 = vsyncadd [#allocation4], %s20
      %s22 = sshll.u32 [#allocation3], 4
      %s23 = int_to_ptr.vmem [resolvable:$true] %s22
      %28 = dma.hbm_to_vmem [thread:$0]  %s2, 128, %s23, [#allocation4], 64, 64, 4
    $region9: #{chebnet_apply.1} parent=1 // pred_fallthru
      _
    // Predicated region
    $region10: #{chebnet_apply.1} parent=1 // pred_check
      _
    $region11: #{chebnet_apply.1} parent=1 // pred_check_branch
      %30 = sbr.rel (0) target = $region13
    $region12: #{chebnet_apply.1} parent=1 // pred_region
      %s32 = ssub.s32 128, 128
      %33 = vsyncadd [#allocation6], %s32
      %s34 = sshll.u32 [#allocation5], 4
      %s35 = int_to_ptr.vmem [resolvable:$true] %s34
      %40 = dma.hbm_to_vmem [thread:$0]  %s3, 128, %s35, [#allocation6], 64, 64, 4
    $region13: #{chebnet_apply.1} parent=1 // pred_fallthru
      _
    // Predicated region
    $region14: #{chebnet_apply.1} parent=1 // pred_check
      _
    $region15: #{chebnet_apply.1} parent=1 // pred_check_branch
      %42 = sbr.rel (0) target = $region17
    $region16: #{chebnet_apply.1} parent=1 // pred_region
      _
    $region17: #{chebnet_apply.1} parent=1 // pred_fallthru
      _
    // Predicated region
    $region18: #{chebnet_apply.1} parent=1 // pred_check
      _
    $region19: #{chebnet_apply.1} parent=1 // pred_check_branch
      %44 = sbr.rel (0) target = $region21
    $region20: #{chebnet_apply.1} parent=1 // pred_region
      _
    $region21: #{chebnet_apply.1} parent=1 // pred_fallthru
      _
    // Predicated region
    $region22: #{chebnet_apply.1} parent=1 // pred_check
      _
    $region23: #{chebnet_apply.1} parent=1 // pred_check_branch
      %46 = sbr.rel (0) target = $region25
    $region24: #{chebnet_apply.1} parent=1 // pred_region
      _
    $region25: #{chebnet_apply.1} parent=1 // pred_fallthru
      _
    // Predicated region
    $region26: #{chebnet_apply.1} parent=1 // pred_check
      _
    $region27: #{chebnet_apply.1} parent=1 // pred_check_branch
      %48 = sbr.rel (0) target = $region29
    $region28: #{chebnet_apply.1} parent=1 // pred_region
      _
    $region29: #{chebnet_apply.1} parent=1 // pred_fallthru
      _
    // Predicated region
    $region30: #{chebnet_apply.1} parent=1 // pred_check
      _
    $region31: #{chebnet_apply.1} parent=1 // pred_check_branch
      %50 = sbr.rel (0) target = $region33
    $region32: #{chebnet_apply.1} parent=1 // pred_region
      %51 = dma.done [#allocation4], 128
    $region33: #{chebnet_apply.1} parent=1 // pred_fallthru
      _
    // Predicated region
    $region34: #{chebnet_apply.1} parent=1 // pred_check
      _
    $region35: #{chebnet_apply.1} parent=1 // pred_check_branch
      %53 = sbr.rel (0) target = $region37
    $region36: #{chebnet_apply.1} parent=1 // pred_region
      %54 = dma.done [#allocation6], 128
    $region37: #{chebnet_apply.1} parent=1 // pred_fallthru
      _
    $region38: #{chebnet_apply.1} parent=1
      #allocation7 [shape = 's32[1]{0}', space=sflag, size = 0x4, scoped, tag = 'scoped memory for chebnet_apply.1']
      %p57 = scmp.lt.u32.totalorder 32, 8
      %p58 = pneg %p57
      // Predicated region
      $region39: #{chebnet_apply.1} parent=38 // pred_check
        _
      $region40: #{chebnet_apply.1} parent=38 // pred_check_branch
        %60 = sbr.rel (%p57) target = $region42
      $region41: #{chebnet_apply.1} parent=38 // pred_region
        %s76 = sand.u32 32, 7
        %p77 = scmp.eq.s32.totalorder %s76, 0
        // Predicated region
        $region54: #{chebnet_apply.1} parent=41 // pred_check
          %p78 = pneg %p77
        $region55: #{chebnet_apply.1} parent=41 // pred_check_branch
          %80 = sbr.rel (%p78) target = $region57
        $region56: #{chebnet_apply.1} parent=41 // pred_region
          loop: start=0, step=1, limit=1
          $region58: #{chebnet_apply.1} parent=56 // loop_pre_header
            _
          $region59: #{chebnet_apply.1} parent=56 // loop_header
            %s82 = sphi 0, %s86
            %p83 = scmp.ge.s32.totalorder %s82, 1
            %s87 = sphi %s0, %s0
            %s88 = sphi [#allocation2], [#allocation2]
          $region60: #{chebnet_apply.1} parent=56 // loop_header_branch
            %85 = sbr.rel (%p83) target = $region64
          $region61: #{chebnet_apply.1} parent=56 // loop_body
            %v89 = vld [vmem:[%s87] sm:$0xff]
            %90 = vst [vmem:[%s88] sm:$0xff] %v89
            %v91 = vld [vmem:[%s87 + $0x8] sm:$0xff]
            %92 = vst [vmem:[%s88 + $0x8] sm:$0xff] %v91
            %v93 = vld [vmem:[%s87 + $0x10] sm:$0xff]
            %94 = vst [vmem:[%s88 + $0x10] sm:$0xff] %v93
            %v95 = vld [vmem:[%s87 + $0x18] sm:$0xff]
            %96 = vst [vmem:[%s88 + $0x18] sm:$0xff] %v95
          $region62: #{chebnet_apply.1} parent=56 // loop_footer
            %s86 = sadd.s32 1, %s82
          $region63: #{chebnet_apply.1} parent=56 // loop_footer_branch
            %81 = sbr.rel target = $region59
          $region64: #{chebnet_apply.1} parent=56 // loop_exit
            _
        $region57: #{chebnet_apply.1} parent=41 // pred_fallthru
          _
        %p97 = pneg %p77
        // Predicated region
        $region65: #{chebnet_apply.1} parent=41 // pred_check
          _
        $region66: #{chebnet_apply.1} parent=41 // pred_check_branch
          %99 = sbr.rel (%p77) target = $region68
        $region67: #{chebnet_apply.1} parent=41 // pred_region
          %s100 = sand.u32 32, 7
        $region68: #{chebnet_apply.1} parent=41 // pred_fallthru
          _
      $region42: #{chebnet_apply.1} parent=38 // pred_fallthru
        _
      // Predicated region
      $region43: #{chebnet_apply.1} parent=38 // pred_check
        %p61 = pneg %p57
      $region44: #{chebnet_apply.1} parent=38 // pred_check_branch
        %63 = sbr.rel (%p61) target = $region46
      $region45: #{chebnet_apply.1} parent=38 // pred_region
        %s64 = sshll.u32 1, 32
        %s65 = ssub.s32 %s64, 1
        loop: start=0, step=1, limit=1
        $region47: #{chebnet_apply.1} parent=45 // loop_pre_header
          _
        $region48: #{chebnet_apply.1} parent=45 // loop_header
          %s67 = sphi 0, %s71
          %p68 = scmp.ge.s32.totalorder %s67, 1
          %s72 = sphi %s0, %s0
          %s73 = sphi [#allocation2], [#allocation2]
        $region49: #{chebnet_apply.1} parent=45 // loop_header_branch
          %70 = sbr.rel (%p68) target = $region53
        $region50: #{chebnet_apply.1} parent=45 // loop_body
          %v74 = vld [vmem:[%s72] sm:%s65]
          %75 = vst [vmem:[%s73] sm:%s65] %v74
        $region51: #{chebnet_apply.1} parent=45 // loop_footer
          %s71 = sadd.s32 1, %s67
        $region52: #{chebnet_apply.1} parent=45 // loop_footer_branch
          %66 = sbr.rel target = $region48
        $region53: #{chebnet_apply.1} parent=45 // loop_exit
          _
      $region46: #{chebnet_apply.1} parent=38 // pred_fallthru
        _
      // Predicated region
      $region69: #{chebnet_apply.1} parent=38 // pred_check
        _
      $region70: #{chebnet_apply.1} parent=38 // pred_check_branch
        %103 = sbr.rel (0) target = $region72
      $region71: #{chebnet_apply.1} parent=38 // pred_region
        %104 = vsyncadd [#allocation7], 512
      $region72: #{chebnet_apply.1} parent=38 // pred_fallthru
        _
      %s105 = smul.u32 4, 8
      %s106 = smul.u32 %s105, 1
      %s107 = sshll.u32 %s106, 4
      %108 = dma.done [#allocation7], %s107
    %v109 = vld [vmem:[#allocation2] sm:$0xf]
    %v110 = vld [vmem:[#allocation2 + $0x4] sm:$0xf]
    %v111 = vld [vmem:[#allocation2 + $0x8] sm:$0xf]
    %v112 = vld [vmem:[#allocation2 + $0xc] sm:$0xf]
    %v113 = vld [vmem:[#allocation2 + $0x10] sm:$0xf]
    %v114 = vld [vmem:[#allocation2 + $0x14] sm:$0xf]
    %v115 = vld [vmem:[#allocation2 + $0x18] sm:$0xf]
    %v116 = vld [vmem:[#allocation2 + $0x1c] sm:$0xf]
    %v117 = vld [vmem:[%s1] sm:$0xf]
    %v118 = vld [vmem:[%s1 + $0x4] sm:$0xf]
    %v119 = vld [vmem:[%s1 + $0x8] sm:$0xf]
    %v120 = vld [vmem:[%s1 + $0xc] sm:$0xf]
    %v121 = vld [vmem:[%s1 + $0x10] sm:$0xf]
    %v122 = vld [vmem:[%s1 + $0x14] sm:$0xf]
    %v123 = vld [vmem:[%s1 + $0x18] sm:$0xf]
    %v124 = vld [vmem:[%s1 + $0x1c] sm:$0xf]
    %v125 = vld [vmem:[#allocation3] sm:$0xf]
    %v126 = vld [vmem:[#allocation3 + $0x4] sm:$0xf]
    %v127 = vld [vmem:[#allocation5] sm:$0xf]
    %v128 = vld [vmem:[#allocation5 + $0x4] sm:$0xf]
    %v129 = vld [vmem:[%s4] sm:$0x1]
    %v138 = vunpack.c.l.b16 %v109
    %v139 = vunpack.c.l.b16 %v110
    %v140 = vunpack.c.l.b16 %v111
    %v141 = vunpack.c.l.b16 %v112
    %v142 = vunpack.c.l.b16 %v113
    %v143 = vunpack.c.l.b16 %v114
    %v144 = vunpack.c.l.b16 %v115
    %v145 = vunpack.c.l.b16 %v116
    %v146 = vpack.c.b16 %v139, %v138
    %v147 = vpack.c.b16 %v141, %v140
    %v148 = vpack.c.b16 %v143, %v142
    %v149 = vpack.c.b16 %v145, %v144
    %v158 = vunpack.c.l.b16 %v117
    %v159 = vunpack.c.l.b16 %v118
    %v160 = vunpack.c.l.b16 %v119
    %v161 = vunpack.c.l.b16 %v120
    %v162 = vunpack.c.l.b16 %v121
    %v163 = vunpack.c.l.b16 %v122
    %v164 = vunpack.c.l.b16 %v123
    %v165 = vunpack.c.l.b16 %v124
    %v166 = vpack.c.b16 %v159, %v158
    %v167 = vpack.c.b16 %v161, %v160
    %v168 = vpack.c.b16 %v163, %v162
    %v169 = vpack.c.b16 %v165, %v164
    %vm174 = vcmask 523264
    %v176 = vsel %vm174, %v146, 0
    %v179 = vsel %vm174, %v147, 0
    %v182 = vsel %vm174, %v148, 0
    %v185 = vsel %vm174, %v149, 0
    %187 = vmatprep.subr.bf16.mxu0 0
    %188 = vmatpush1.bf16.msra.mxu0 0
    %189 = vmatprep.subr.bf16.mxu0 0
    %190 = vmatpush1.bf16.msra.mxu0 0
    %191 = vmatprep.subr.bf16.mxu0 0
    %192 = vmatpush1.bf16.msra.mxu0 0
    %193 = vmatprep.subr.bf16.mxu0 0
    %194 = vmatpush1.bf16.msra.mxu0 0
    %195 = vmatprep.subr.bf16.mxu0 0
    %196 = vmatpush1.bf16.msra.mxu0 %v169
    %197 = vmatprep.subr.bf16.mxu0 0
    %198 = vmatpush1.bf16.msra.mxu0 %v168
    %199 = vmatprep.subr.bf16.mxu0 0
    %200 = vmatpush1.bf16.msra.mxu0 %v167
    %201 = vmatprep.subr.bf16.mxu0 0
    %202 = vmatpush1.bf16.msra.mxu0 %v166
    %203 = vmatprep.subr.bf16.mxu0 0
    %204 = vmatpush2.bf16.msra.mxu0 0
    %205 = vmatprep.subr.bf16.mxu0 0
    %206 = vmatpush2.bf16.msra.mxu0 0
    %207 = vmatprep.subr.bf16.mxu0 0
    %208 = vmatpush2.bf16.msra.mxu0 0
    %209 = vmatprep.subr.bf16.mxu0 0
    %210 = vmatpush2.bf16.msra.mxu0 0
    %211 = vmatprep.subr.bf16.mxu0 0
    %212 = vmatpush2.bf16.msra.mxu0 0
    %213 = vmatprep.subr.bf16.mxu0 0
    %214 = vmatpush2.bf16.msra.mxu0 0
    %215 = vmatprep.subr.bf16.mxu0 0
    %216 = vmatpush2.bf16.msra.mxu0 0
    %217 = vmatprep.subr.bf16.mxu0 0
    %218 = vmatpush2.bf16.msra.mxu0 0
    %219 = vmatprep.mubr.bf16.mxu0 0
    %220 = vmatmul.mubr.bf16.gmra.mxu0 %v176
    %v221 = vpop.f32.mrf.mxu0
    %v222 = vadd.f32 0.0, %v221
    %v223 = vpop.f32.mrf.mxu0
    %v224 = vpop.f32.mrf.mxu0
    %v225 = vadd.f32 0.0, %v224
    %v226 = vpop.f32.mrf.mxu0
    %227 = vmatprep.mubr.bf16.mxu0 0
    %228 = vmatmul.mubr.bf16.gmra.mxu0 %v179
    %v229 = vpop.f32.mrf.mxu0
    %v230 = vadd.f32 0.0, %v229
    %v231 = vpop.f32.mrf.mxu0
    %v232 = vpop.f32.mrf.mxu0
    %v233 = vadd.f32 0.0, %v232
    %v234 = vpop.f32.mrf.mxu0
    %235 = vmatprep.mubr.bf16.mxu0 0
    %236 = vmatmul.mubr.bf16.gmra.mxu0 %v182
    %v237 = vpop.f32.mrf.mxu0
    %v238 = vadd.f32 0.0, %v237
    %v239 = vpop.f32.mrf.mxu0
    %v240 = vpop.f32.mrf.mxu0
    %v241 = vadd.f32 0.0, %v240
    %v242 = vpop.f32.mrf.mxu0
    %243 = vmatprep.mubr.bf16.mxu0 0
    %244 = vmatmul.mubr.bf16.gmra.mxu0 %v185
    %v245 = vpop.f32.mrf.mxu0
    %v246 = vadd.f32 0.0, %v245
    %v247 = vpop.f32.mrf.mxu0
    %v248 = vpop.f32.mrf.mxu0
    %v249 = vadd.f32 0.0, %v248
    %v250 = vpop.f32.mrf.mxu0
    %251 = vdwg.mxu0
    %v252 = vpack.c.bf16 %v225, %v222
    %v253 = vpack.c.bf16 %v233, %v230
    %v254 = vpack.c.bf16 %v241, %v238
    %v255 = vpack.c.bf16 %v249, %v246
    %v258 = vunpack.c.l.b16 %v127
    %v259 = vunpack.c.l.b16 %v128
    %v260 = vpack.c.b16 %v259, %v258
    %vm262 = vcmask 130048
    %v264 = vsel %vm262, %v252, 0
    %v267 = vsel %vm262, %v253, 0
    %v270 = vsel %vm262, %v254, 0
    %v273 = vsel %vm262, %v255, 0
    %275 = vmatprep.subr.bf16.mxu0 0
    %276 = vmatpush1.bf16.msra.mxu0 0
    %277 = vmatprep.subr.bf16.mxu0 0
    %278 = vmatpush1.bf16.msra.mxu0 0
    %279 = vmatprep.subr.bf16.mxu0 0
    %280 = vmatpush1.bf16.msra.mxu0 0
    %281 = vmatprep.subr.bf16.mxu0 0
    %282 = vmatpush1.bf16.msra.mxu0 0
    %283 = vmatprep.subr.bf16.mxu0 0
    %284 = vmatpush1.bf16.msra.mxu0 0
    %285 = vmatprep.subr.bf16.mxu0 0
    %286 = vmatpush1.bf16.msra.mxu0 0
    %287 = vmatprep.subr.bf16.mxu0 0
    %288 = vmatpush1.bf16.msra.mxu0 0
    %289 = vmatprep.subr.bf16.mxu0 0
    %290 = vmatpush1.bf16.msra.mxu0 %v260
    %291 = vmatprep.subr.bf16.mxu0 0
    %292 = vmatpush2.bf16.msra.mxu0 0
    %293 = vmatprep.subr.bf16.mxu0 0
    %294 = vmatpush2.bf16.msra.mxu0 0
    %295 = vmatprep.subr.bf16.mxu0 0
    %296 = vmatpush2.bf16.msra.mxu0 0
    %297 = vmatprep.subr.bf16.mxu0 0
    %298 = vmatpush2.bf16.msra.mxu0 0
    %299 = vmatprep.subr.bf16.mxu0 0
    %300 = vmatpush2.bf16.msra.mxu0 0
    %301 = vmatprep.subr.bf16.mxu0 0
    %302 = vmatpush2.bf16.msra.mxu0 0
    %303 = vmatprep.subr.bf16.mxu0 0
    %304 = vmatpush2.bf16.msra.mxu0 0
    %305 = vmatprep.subr.bf16.mxu0 0
    %306 = vmatpush2.bf16.msra.mxu0 0
    %307 = vmatprep.mubr.bf16.mxu0 0
    %308 = vmatmul.mubr.bf16.gmra.mxu0 %v264
    %v309 = vpop.f32.mrf.mxu0
    %v310 = vadd.f32 0.0, %v309
    %v311 = vpop.f32.mrf.mxu0
    %v312 = vpop.f32.mrf.mxu0
    %v313 = vadd.f32 0.0, %v312
    %v314 = vpop.f32.mrf.mxu0
    %315 = vmatprep.mubr.bf16.mxu0 0
    %316 = vmatmul.mubr.bf16.gmra.mxu0 %v267
    %v317 = vpop.f32.mrf.mxu0
    %v318 = vadd.f32 0.0, %v317
    %v319 = vpop.f32.mrf.mxu0
    %v320 = vpop.f32.mrf.mxu0
    %v321 = vadd.f32 0.0, %v320
    %v322 = vpop.f32.mrf.mxu0
    %323 = vmatprep.mubr.bf16.mxu0 0
    %324 = vmatmul.mubr.bf16.gmra.mxu0 %v270
    %v325 = vpop.f32.mrf.mxu0
    %v326 = vadd.f32 0.0, %v325
    %v327 = vpop.f32.mrf.mxu0
    %v328 = vpop.f32.mrf.mxu0
    %v329 = vadd.f32 0.0, %v328
    %v330 = vpop.f32.mrf.mxu0
    %331 = vmatprep.mubr.bf16.mxu0 0
    %332 = vmatmul.mubr.bf16.gmra.mxu0 %v273
    %v333 = vpop.f32.mrf.mxu0
    %v334 = vadd.f32 0.0, %v333
    %v335 = vpop.f32.mrf.mxu0
    %v336 = vpop.f32.mrf.mxu0
    %v337 = vadd.f32 0.0, %v336
    %v338 = vpop.f32.mrf.mxu0
    %339 = vdwg.mxu0
    %v342 = vunpack.c.l.b16 %v125
    %v343 = vunpack.c.l.b16 %v126
    %v344 = vpack.c.b16 %v343, %v342
    %v347 = vsel %vm262, %v166, 0
    %v350 = vsel %vm262, %v167, 0
    %v353 = vsel %vm262, %v168, 0
    %v356 = vsel %vm262, %v169, 0
    %358 = vmatprep.subr.bf16.mxu0 0
    %359 = vmatpush1.bf16.msra.mxu0 0
    %360 = vmatprep.subr.bf16.mxu0 0
    %361 = vmatpush1.bf16.msra.mxu0 0
    %362 = vmatprep.subr.bf16.mxu0 0
    %363 = vmatpush1.bf16.msra.mxu0 0
    %364 = vmatprep.subr.bf16.mxu0 0
    %365 = vmatpush1.bf16.msra.mxu0 0
    %366 = vmatprep.subr.bf16.mxu0 0
    %367 = vmatpush1.bf16.msra.mxu0 0
    %368 = vmatprep.subr.bf16.mxu0 0
    %369 = vmatpush1.bf16.msra.mxu0 0
    %370 = vmatprep.subr.bf16.mxu0 0
    %371 = vmatpush1.bf16.msra.mxu0 0
    %372 = vmatprep.subr.bf16.mxu0 0
    %373 = vmatpush1.bf16.msra.mxu0 %v344
    %374 = vmatprep.subr.bf16.mxu0 0
    %375 = vmatpush2.bf16.msra.mxu0 0
    %376 = vmatprep.subr.bf16.mxu0 0
    %377 = vmatpush2.bf16.msra.mxu0 0
    %378 = vmatprep.subr.bf16.mxu0 0
    %379 = vmatpush2.bf16.msra.mxu0 0
    %380 = vmatprep.subr.bf16.mxu0 0
    %381 = vmatpush2.bf16.msra.mxu0 0
    %382 = vmatprep.subr.bf16.mxu0 0
    %383 = vmatpush2.bf16.msra.mxu0 0
    %384 = vmatprep.subr.bf16.mxu0 0
    %385 = vmatpush2.bf16.msra.mxu0 0
    %386 = vmatprep.subr.bf16.mxu0 0
    %387 = vmatpush2.bf16.msra.mxu0 0
    %388 = vmatprep.subr.bf16.mxu0 0
    %389 = vmatpush2.bf16.msra.mxu0 0
    %390 = vmatprep.mubr.bf16.mxu0 0
    %391 = vmatmul.mubr.bf16.gmra.mxu0 %v347
    %v392 = vpop.f32.mrf.mxu0
    %v393 = vadd.f32 %v310, %v392
    %v394 = vpop.f32.mrf.mxu0
    %v395 = vpop.f32.mrf.mxu0
    %v396 = vadd.f32 %v313, %v395
    %v397 = vpop.f32.mrf.mxu0
    %398 = vmatprep.mubr.bf16.mxu0 0
    %399 = vmatmul.mubr.bf16.gmra.mxu0 %v350
    %v400 = vpop.f32.mrf.mxu0
    %v401 = vadd.f32 %v318, %v400
    %v402 = vpop.f32.mrf.mxu0
    %v403 = vpop.f32.mrf.mxu0
    %v404 = vadd.f32 %v321, %v403
    %v405 = vpop.f32.mrf.mxu0
    %406 = vmatprep.mubr.bf16.mxu0 0
    %407 = vmatmul.mubr.bf16.gmra.mxu0 %v353
    %v408 = vpop.f32.mrf.mxu0
    %v409 = vadd.f32 %v326, %v408
    %v410 = vpop.f32.mrf.mxu0
    %v411 = vpop.f32.mrf.mxu0
    %v412 = vadd.f32 %v329, %v411
    %v413 = vpop.f32.mrf.mxu0
    %414 = vmatprep.mubr.bf16.mxu0 0
    %415 = vmatmul.mubr.bf16.gmra.mxu0 %v356
    %v416 = vpop.f32.mrf.mxu0
    %v417 = vadd.f32 %v334, %v416
    %v418 = vpop.f32.mrf.mxu0
    %v419 = vpop.f32.mrf.mxu0
    %v420 = vadd.f32 %v337, %v419
    %v421 = vpop.f32.mrf.mxu0
    %422 = vdwg.mxu0
    %v424 = vlaneseq
    %v425 = vshrl.u32 %v424, 7
    %v426 = vsub.s32 0, %v425
    %v427 = vrot.slane %v129, %v426
    %v429 = vadd.f32 %v393, %v427
    %v430 = vadd.f32 %v396, %v427
    %v431 = vadd.f32 %v401, %v427
    %v432 = vadd.f32 %v404, %v427
    %v433 = vadd.f32 %v409, %v427
    %v434 = vadd.f32 %v412, %v427
    %v435 = vadd.f32 %v417, %v427
    %v436 = vadd.f32 %v420, %v427
    %v437 = vpack.c.bf16 %v430, %v429
    %v438 = vpack.c.bf16 %v432, %v431
    %v439 = vpack.c.bf16 %v434, %v433
    %v440 = vpack.c.bf16 %v436, %v435
    %v441 = vld [vmem:[%s5] sm:$0xf]
    %v442 = vld [vmem:[%s5 + $0x4] sm:$0xf]
    %v443 = vld [vmem:[%s5 + $0x8] sm:$0xf]
    %v444 = vld [vmem:[%s5 + $0xc] sm:$0xf]
    %v445 = vld [vmem:[%s6] sm:$0xf]
    %v446 = vld [vmem:[%s6 + $0x4] sm:$0xf]
    %v447 = vld [vmem:[%s6 + $0x8] sm:$0xf]
    %v448 = vld [vmem:[%s6 + $0xc] sm:$0xf]
    %v449 = vld [vmem:[%s7] sm:$0x1]
    %450 = vmatprep.subr.bf16.mxu0 0
    %451 = vmatpush1.bf16.msra.mxu0 0
    %452 = vmatprep.subr.bf16.mxu0 0
    %453 = vmatpush1.bf16.msra.mxu0 0
    %454 = vmatprep.subr.bf16.mxu0 0
    %455 = vmatpush1.bf16.msra.mxu0 0
    %456 = vmatprep.subr.bf16.mxu0 0
    %457 = vmatpush1.bf16.msra.mxu0 0
    %458 = vmatprep.subr.bf16.mxu0 0
    %459 = vmatpush1.bf16.msra.mxu0 %v440
    %460 = vmatprep.subr.bf16.mxu0 0
    %461 = vmatpush1.bf16.msra.mxu0 %v439
    %462 = vmatprep.subr.bf16.mxu0 0
    %463 = vmatpush1.bf16.msra.mxu0 %v438
    %464 = vmatprep.subr.bf16.mxu0 0
    %465 = vmatpush1.bf16.msra.mxu0 %v437
    %466 = vmatprep.subr.bf16.mxu0 0
    %467 = vmatpush2.bf16.msra.mxu0 0
    %468 = vmatprep.subr.bf16.mxu0 0
    %469 = vmatpush2.bf16.msra.mxu0 0
    %470 = vmatprep.subr.bf16.mxu0 0
    %471 = vmatpush2.bf16.msra.mxu0 0
    %472 = vmatprep.subr.bf16.mxu0 0
    %473 = vmatpush2.bf16.msra.mxu0 0
    %474 = vmatprep.subr.bf16.mxu0 0
    %475 = vmatpush2.bf16.msra.mxu0 0
    %476 = vmatprep.subr.bf16.mxu0 0
    %477 = vmatpush2.bf16.msra.mxu0 0
    %478 = vmatprep.subr.bf16.mxu0 0
    %479 = vmatpush2.bf16.msra.mxu0 0
    %480 = vmatprep.subr.bf16.mxu0 0
    %481 = vmatpush2.bf16.msra.mxu0 0
    %482 = vmatprep.mubr.bf16.mxu0 0
    %483 = vmatmul.mubr.bf16.gmra.mxu0 %v176
    %v484 = vpop.f32.mrf.mxu0
    %v485 = vadd.f32 0.0, %v484
    %v486 = vpop.f32.mrf.mxu0
    %v487 = vpop.f32.mrf.mxu0
    %v488 = vadd.f32 0.0, %v487
    %v489 = vpop.f32.mrf.mxu0
    %490 = vmatprep.mubr.bf16.mxu0 0
    %491 = vmatmul.mubr.bf16.gmra.mxu0 %v179
    %v492 = vpop.f32.mrf.mxu0
    %v493 = vadd.f32 0.0, %v492
    %v494 = vpop.f32.mrf.mxu0
    %v495 = vpop.f32.mrf.mxu0
    %v496 = vadd.f32 0.0, %v495
    %v497 = vpop.f32.mrf.mxu0
    %498 = vmatprep.mubr.bf16.mxu0 0
    %499 = vmatmul.mubr.bf16.gmra.mxu0 %v182
    %v500 = vpop.f32.mrf.mxu0
    %v501 = vadd.f32 0.0, %v500
    %v502 = vpop.f32.mrf.mxu0
    %v503 = vpop.f32.mrf.mxu0
    %v504 = vadd.f32 0.0, %v503
    %v505 = vpop.f32.mrf.mxu0
    %506 = vmatprep.mubr.bf16.mxu0 0
    %507 = vmatmul.mubr.bf16.gmra.mxu0 %v185
    %v508 = vpop.f32.mrf.mxu0
    %v509 = vadd.f32 0.0, %v508
    %v510 = vpop.f32.mrf.mxu0
    %v511 = vpop.f32.mrf.mxu0
    %v512 = vadd.f32 0.0, %v511
    %v513 = vpop.f32.mrf.mxu0
    %514 = vdwg.mxu0
    %v515 = vpack.c.bf16 %v488, %v485
    %v516 = vpack.c.bf16 %v496, %v493
    %v517 = vpack.c.bf16 %v504, %v501
    %v518 = vpack.c.bf16 %v512, %v509
    %v523 = vunpack.c.l.b16 %v445
    %v524 = vunpack.c.l.b16 %v446
    %v525 = vunpack.c.l.b16 %v447
    %v526 = vunpack.c.l.b16 %v448
    %v527 = vpack.c.b16 %v524, %v523
    %v528 = vpack.c.b16 %v526, %v525
    %vm531 = vcmask 261120
    %v533 = vsel %vm531, %v515, 0
    %v536 = vsel %vm531, %v516, 0
    %v539 = vsel %vm531, %v517, 0
    %v542 = vsel %vm531, %v518, 0
    %544 = vmatprep.subr.bf16.mxu0 0
    %545 = vmatpush1.bf16.msra.mxu0 0
    %546 = vmatprep.subr.bf16.mxu0 0
    %547 = vmatpush1.bf16.msra.mxu0 0
    %548 = vmatprep.subr.bf16.mxu0 0
    %549 = vmatpush1.bf16.msra.mxu0 0
    %550 = vmatprep.subr.bf16.mxu0 0
    %551 = vmatpush1.bf16.msra.mxu0 0
    %552 = vmatprep.subr.bf16.mxu0 0
    %553 = vmatpush1.bf16.msra.mxu0 0
    %554 = vmatprep.subr.bf16.mxu0 0
    %555 = vmatpush1.bf16.msra.mxu0 0
    %556 = vmatprep.subr.bf16.mxu0 0
    %557 = vmatpush1.bf16.msra.mxu0 %v528
    %558 = vmatprep.subr.bf16.mxu0 0
    %559 = vmatpush1.bf16.msra.mxu0 %v527
    %560 = vmatprep.subr.bf16.mxu0 0
    %561 = vmatpush2.bf16.msra.mxu0 0
    %562 = vmatprep.subr.bf16.mxu0 0
    %563 = vmatpush2.bf16.msra.mxu0 0
    %564 = vmatprep.subr.bf16.mxu0 0
    %565 = vmatpush2.bf16.msra.mxu0 0
    %566 = vmatprep.subr.bf16.mxu0 0
    %567 = vmatpush2.bf16.msra.mxu0 0
    %568 = vmatprep.subr.bf16.mxu0 0
    %569 = vmatpush2.bf16.msra.mxu0 0
    %570 = vmatprep.subr.bf16.mxu0 0
    %571 = vmatpush2.bf16.msra.mxu0 0
    %572 = vmatprep.subr.bf16.mxu0 0
    %573 = vmatpush2.bf16.msra.mxu0 0
    %574 = vmatprep.subr.bf16.mxu0 0
    %575 = vmatpush2.bf16.msra.mxu0 0
    %576 = vmatprep.mubr.bf16.mxu0 0
    %577 = vmatmul.mubr.bf16.gmra.mxu0 %v533
    %v578 = vpop.f32.mrf.mxu0
    %v579 = vadd.f32 0.0, %v578
    %v580 = vpop.f32.mrf.mxu0
    %v581 = vpop.f32.mrf.mxu0
    %v582 = vadd.f32 0.0, %v581
    %v583 = vpop.f32.mrf.mxu0
    %584 = vmatprep.mubr.bf16.mxu0 0
    %585 = vmatmul.mubr.bf16.gmra.mxu0 %v536
    %v586 = vpop.f32.mrf.mxu0
    %v587 = vadd.f32 0.0, %v586
    %v588 = vpop.f32.mrf.mxu0
    %v589 = vpop.f32.mrf.mxu0
    %v590 = vadd.f32 0.0, %v589
    %v591 = vpop.f32.mrf.mxu0
    %592 = vmatprep.mubr.bf16.mxu0 0
    %593 = vmatmul.mubr.bf16.gmra.mxu0 %v539
    %v594 = vpop.f32.mrf.mxu0
    %v595 = vadd.f32 0.0, %v594
    %v596 = vpop.f32.mrf.mxu0
    %v597 = vpop.f32.mrf.mxu0
    %v598 = vadd.f32 0.0, %v597
    %v599 = vpop.f32.mrf.mxu0
    %600 = vmatprep.mubr.bf16.mxu0 0
    %601 = vmatmul.mubr.bf16.gmra.mxu0 %v542
    %v602 = vpop.f32.mrf.mxu0
    %v603 = vadd.f32 0.0, %v602
    %v604 = vpop.f32.mrf.mxu0
    %v605 = vpop.f32.mrf.mxu0
    %v606 = vadd.f32 0.0, %v605
    %v607 = vpop.f32.mrf.mxu0
    %608 = vdwg.mxu0
    %v613 = vunpack.c.l.b16 %v441
    %v614 = vunpack.c.l.b16 %v442
    %v615 = vunpack.c.l.b16 %v443
    %v616 = vunpack.c.l.b16 %v444
    %v617 = vpack.c.b16 %v614, %v613
    %v618 = vpack.c.b16 %v616, %v615
    %v622 = vsel %vm531, %v437, 0
    %v625 = vsel %vm531, %v438, 0
    %v628 = vsel %vm531, %v439, 0
    %v631 = vsel %vm531, %v440, 0
    %633 = vmatprep.subr.bf16.mxu0 0
    %634 = vmatpush1.bf16.msra.mxu0 0
    %635 = vmatprep.subr.bf16.mxu0 0
    %636 = vmatpush1.bf16.msra.mxu0 0
    %637 = vmatprep.subr.bf16.mxu0 0
    %638 = vmatpush1.bf16.msra.mxu0 0
    %639 = vmatprep.subr.bf16.mxu0 0
    %640 = vmatpush1.bf16.msra.mxu0 0
    %641 = vmatprep.subr.bf16.mxu0 0
    %642 = vmatpush1.bf16.msra.mxu0 0
    %643 = vmatprep.subr.bf16.mxu0 0
    %644 = vmatpush1.bf16.msra.mxu0 0
    %645 = vmatprep.subr.bf16.mxu0 0
    %646 = vmatpush1.bf16.msra.mxu0 %v618
    %647 = vmatprep.subr.bf16.mxu0 0
    %648 = vmatpush1.bf16.msra.mxu0 %v617
    %649 = vmatprep.subr.bf16.mxu0 0
    %650 = vmatpush2.bf16.msra.mxu0 0
    %651 = vmatprep.subr.bf16.mxu0 0
    %652 = vmatpush2.bf16.msra.mxu0 0
    %653 = vmatprep.subr.bf16.mxu0 0
    %654 = vmatpush2.bf16.msra.mxu0 0
    %655 = vmatprep.subr.bf16.mxu0 0
    %656 = vmatpush2.bf16.msra.mxu0 0
    %657 = vmatprep.subr.bf16.mxu0 0
    %658 = vmatpush2.bf16.msra.mxu0 0
    %659 = vmatprep.subr.bf16.mxu0 0
    %660 = vmatpush2.bf16.msra.mxu0 0
    %661 = vmatprep.subr.bf16.mxu0 0
    %662 = vmatpush2.bf16.msra.mxu0 0
    %663 = vmatprep.subr.bf16.mxu0 0
    %664 = vmatpush2.bf16.msra.mxu0 0
    %665 = vmatprep.mubr.bf16.mxu0 0
    %666 = vmatmul.mubr.bf16.gmra.mxu0 %v622
    %v667 = vpop.f32.mrf.mxu0
    %v668 = vadd.f32 %v579, %v667
    %v669 = vpop.f32.mrf.mxu0
    %v670 = vpop.f32.mrf.mxu0
    %v671 = vadd.f32 %v582, %v670
    %v672 = vpop.f32.mrf.mxu0
    %673 = vmatprep.mubr.bf16.mxu0 0
    %674 = vmatmul.mubr.bf16.gmra.mxu0 %v625
    %v675 = vpop.f32.mrf.mxu0
    %v676 = vadd.f32 %v587, %v675
    %v677 = vpop.f32.mrf.mxu0
    %v678 = vpop.f32.mrf.mxu0
    %v679 = vadd.f32 %v590, %v678
    %v680 = vpop.f32.mrf.mxu0
    %681 = vmatprep.mubr.bf16.mxu0 0
    %682 = vmatmul.mubr.bf16.gmra.mxu0 %v628
    %v683 = vpop.f32.mrf.mxu0
    %v684 = vadd.f32 %v595, %v683
    %v685 = vpop.f32.mrf.mxu0
    %v686 = vpop.f32.mrf.mxu0
    %v687 = vadd.f32 %v598, %v686
    %v688 = vpop.f32.mrf.mxu0
    %689 = vmatprep.mubr.bf16.mxu0 0
    %690 = vmatmul.mubr.bf16.gmra.mxu0 %v631
    %v691 = vpop.f32.mrf.mxu0
    %v692 = vadd.f32 %v603, %v691
    %v693 = vpop.f32.mrf.mxu0
    %v694 = vpop.f32.mrf.mxu0
    %v695 = vadd.f32 %v606, %v694
    %v696 = vpop.f32.mrf.mxu0
    %697 = vdwg.mxu0
    %v699 = vlaneseq
    %v700 = vshrl.u32 %v699, 7
    %v701 = vsub.s32 0, %v700
    %v702 = vrot.slane %v449, %v701
    %v704 = vadd.f32 %v668, %v702
    %v705 = vadd.f32 %v671, %v702
    %v706 = vadd.f32 %v676, %v702
    %v707 = vadd.f32 %v679, %v702
    %v708 = vadd.f32 %v684, %v702
    %v709 = vadd.f32 %v687, %v702
    %v710 = vadd.f32 %v692, %v702
    %v711 = vadd.f32 %v695, %v702
    %712 = vst [vmem:[%s8] sm:$0xff] %v704
    %713 = vst [vmem:[%s8 + $0x8] sm:$0xff] %v705
    %714 = vst [vmem:[%s8 + $0x10] sm:$0xff] %v706
    %715 = vst [vmem:[%s8 + $0x18] sm:$0xff] %v707
    %716 = vst [vmem:[%s8 + $0x20] sm:$0xff] %v708
    %717 = vst [vmem:[%s8 + $0x28] sm:$0xff] %v709
    %718 = vst [vmem:[%s8 + $0x30] sm:$0xff] %v710
    %719 = vst [vmem:[%s8 + $0x38] sm:$0xff] %v711
    // Predicated region
    $region73: #{chebnet_apply.1} parent=1 // pred_check
      _
    $region74: #{chebnet_apply.1} parent=1 // pred_check_branch
      %721 = sbr.rel (0) target = $region76
    $region75: #{chebnet_apply.1} parent=1 // pred_region
      _
    $region76: #{chebnet_apply.1} parent=1 // pred_fallthru
      _
    // Predicated region
    $region77: #{chebnet_apply.1} parent=1 // pred_check
      _
    $region78: #{chebnet_apply.1} parent=1 // pred_check_branch
      %723 = sbr.rel (0) target = $region80
    $region79: #{chebnet_apply.1} parent=1 // pred_region
      _
    $region80: #{chebnet_apply.1} parent=1 // pred_fallthru
      _
    %724 = vsyncpa [#allocation4], 1
    %725 = vsyncpa [#allocation6], 1

</llo_original>
